<compile_context>
chip_gen: v6e
topology: v6e:2x2x1
jax: 0.10.0
libtpu: 0.0.40
codegen_flags: <defaults>
</compile_context>

<pallas_src>
import functools

import jax
import jax.numpy as jnp
from jax import lax
from jax.experimental import pallas as pl
from jax.experimental.pallas import tpu as pltpu


_MIB = 1024 * 1024


def _sublane_align(itemsize):
    # Sublane alignment per element width (f32: 8, bf16: 16, int8/fp8: 32).
    if itemsize >= 4:
        return 8
    if itemsize == 2:
        return 16
    return 32


def _round_up(x, m):
    return ((x + m - 1) // m) * m


def _vmem_capacity_bytes():
    try:
        info = pltpu.get_tpu_info()
        cap = int(getattr(info, "vmem_capacity_bytes", 0) or 0)
        if cap > 0:
            return cap
    except Exception:
        pass
    # Conservative default (v7x has 64 MiB per TensorCore).
    return 64 * _MIB


def _vmem_plan():
    """Per-generation (tile_budget, vmem_limit_bytes)."""
    cap = _vmem_capacity_bytes()
    # ~1/3 of physical VMEM for the double-buffered tile footprint:
    # ~42 MiB on v5e/v6e (128 MiB physical), ~21 MiB on v7x (64 MiB per TC).
    budget = max(8 * _MIB, cap // 3)
    # Explicit scoped-VMEM limit so v5e's 16 MiB default doesn't bite, while
    # keeping headroom for Mosaic's own intermediates.
    limit = min(int(cap * 3 // 4), 100 * _MIB)
    limit = max(limit, budget + 8 * _MIB)
    return budget, limit


# Conservative per-element VMEM cost: in + out double-buffered (4*itemsize)
# plus f32 widening / reduce working set (~12 B).
def _per_row_bytes(d, itemsize):
    return d * (4 * itemsize + 12)


def _choose_row_tile(n, d, itemsize, budget):
    align = _sublane_align(itemsize)
    if n <= align:
        return n  # block row dim == full array dim is always legal
    per_row = _per_row_bytes(d, itemsize)
    tn = min(n, max(align, budget // per_row))
    tn = max(align, (tn // align) * align)
    # Keep the grid ~8 steps deep when N allows: keeps both v7x TensorCores
    # fed and keeps DMA/compute overlapped on v5e/v6e.
    depth_cap = _round_up(-(-n // 8), align)
    tn = min(tn, max(align, depth_cap))
    return max(align, min(tn, 1024))


# ---------------------------------------------------------------------------
# Main path: one (TN, D) row tile per grid step.
# ---------------------------------------------------------------------------
def _l2norm_kernel(x_ref, o_ref):
    # Widen to f32 per element (free: kernel is HBM-bound, VPU has slack; v5e
    # has no bf16 VPU anyway) so both the square-accumulate and the applied
    # scale match the f32 reference.
    xs = x_ref[...].astype(jnp.float32)
    ss = jnp.sum(xs * xs, axis=1, keepdims=True)
    # 1 / max(||x||, 1e-12) == rsqrt(max(ss, 1e-24)); rsqrt runs on the EUP,
    # avoiding a per-element f32 divide on the VALU.
    inv = lax.rsqrt(jnp.maximum(ss, jnp.float32(1e-24)))
    o_ref[...] = (xs * inv).astype(o_ref.dtype)


# ---------------------------------------------------------------------------
# Wide-row path: D-tiled two-pass (sum-of-squares accumulate, then scale).
# ---------------------------------------------------------------------------
def _ss_accum_kernel(x_ref, ss_ref, *, d_total, td):
    j = pl.program_id(1)

    @pl.when(j == 0)
    def _():
        ss_ref[...] = jnp.zeros_like(ss_ref)

    xs = x_ref[...].astype(jnp.float32)
    # Mask the padded tail of a non-dividing trailing D block out of the sum.
    col = j * td + lax.broadcasted_iota(jnp.int32, xs.shape, 1)
    xs = jnp.where(col < d_total, xs, jnp.float32(0.0))
    ss_ref[...] += jnp.sum(xs * xs, axis=1, keepdims=True)


def _scale_kernel(x_ref, ss_ref, o_ref):
    inv = lax.rsqrt(jnp.maximum(ss_ref[...], jnp.float32(1e-24)))
    o_ref[...] = (x_ref[...].astype(jnp.float32) * inv).astype(o_ref.dtype)


def _l2_normalize_wide(x_flat, tn, td, vmem_limit):
    n, d = x_flat.shape
    row_tiles = pl.cdiv(n, tn)
    d_tiles = pl.cdiv(d, td)
    cp = pltpu.CompilerParams(
        dimension_semantics=("parallel", "arbitrary"),
        vmem_limit_bytes=vmem_limit,
    )
    # Pass 1: per-row sum of squares, accumulated across D chunks (output
    # block resident across the last grid axis -> accumulator, init via when).
    ss = pl.pallas_call(
        functools.partial(_ss_accum_kernel, d_total=d, td=td),
        out_shape=jax.ShapeDtypeStruct((n, 1), jnp.float32),
        grid_spec=pltpu.PrefetchScalarGridSpec(
            num_scalar_prefetch=0,
            grid=(row_tiles, d_tiles),
            in_specs=[pl.BlockSpec((tn, td), lambda i, j: (i, j))],
            out_specs=pl.BlockSpec((tn, 1), lambda i, j: (i, 0)),
        ),
        compiler_params=cp,
    )(x_flat)
    # Pass 2: re-read the D chunks and scale.
    out = pl.pallas_call(
        _scale_kernel,
        out_shape=jax.ShapeDtypeStruct((n, d), x_flat.dtype),
        grid_spec=pltpu.PrefetchScalarGridSpec(
            num_scalar_prefetch=0,
            grid=(row_tiles, d_tiles),
            in_specs=[
                pl.BlockSpec((tn, td), lambda i, j: (i, j)),
                pl.BlockSpec((tn, 1), lambda i, j: (i, 0)),
            ],
            out_specs=pl.BlockSpec((tn, td), lambda i, j: (i, j)),
        ),
        compiler_params=cp,
    )(x_flat, ss)
    return out


def pattern_norm(x, scale=1.0, row_tile=None, d_tile=None):
    """JAX/Pallas equivalent of the PyTorch pattern_norm module.

    `scale` is stored but unused in the reference forward pass (kept for
    parity). `row_tile` / `d_tile` optionally override the auto-chosen tiles
    (`d_tile` forces the D-tiled two-pass path).
    """
    sizes = x.shape
    if len(sizes) <= 2:
        return x  # reference module returns the input unchanged

    n = sizes[0]
    d = 1
    for s in sizes[1:]:
        d *= s

    itemsize = jnp.dtype(x.dtype).itemsize
    align = _sublane_align(itemsize)
    x_flat = x.reshape(n, d)
    budget, vmem_limit = _vmem_plan()

    # TODO(synk): pad D to a multiple of 128 when d % 128 != 0 so output
    # stores stay lane-dense (typical NCHW flattens already satisfy this).

    per_row = _per_row_bytes(d, itemsize)
    min_rows = min(n, align)

    use_wide = d >= 256 and (d_tile is not None or min_rows * per_row > budget)
    if use_wide:
        # Rows too wide for even the minimum-height (dtype-aware) row tile:
        # D-tiled two-pass Pallas path instead of an XLA fallback.
        if d_tile is not None:
            td = max(128, (int(d_tile) // 128) * 128)
        else:
            td = budget // max(1, min_rows * (4 * itemsize + 12))
            td = max(128, (td // 128) * 128)
        if td >= d:
            td = d
        tn = min_rows
        out_flat = _l2_normalize_wide(x_flat, tn, td, vmem_limit)
        return out_flat.reshape(sizes)

    if row_tile is not None:
        tn = max(1, min(int(row_tile), n))
        if tn < n:
            tn = min(n, _round_up(tn, align))
    else:
        tn = _choose_row_tile(n, d, itemsize, budget)
    tn = max(1, min(tn, n))
    num_tiles = pl.cdiv(n, tn)

    out_flat = pl.pallas_call(
        _l2norm_kernel,
        out_shape=jax.ShapeDtypeStruct((n, d), x.dtype),
        grid_spec=pltpu.PrefetchScalarGridSpec(
            num_scalar_prefetch=0,
            grid=(num_tiles,),
            in_specs=[pl.BlockSpec((tn, d), lambda i: (i, 0))],
            out_specs=pl.BlockSpec((tn, d), lambda i: (i, 0)),
        ),
        compiler_params=pltpu.CompilerParams(
            # Rows are independent per grid step -> parallel (megacore / 2-TC
            # sharding on v7x; harmless on v5e/v6e).
            dimension_semantics=("parallel",),
            vmem_limit_bytes=vmem_limit,
        ),
    )(x_flat)

    return out_flat.reshape(sizes)


if __name__ == "__main__":
    key = jax.random.PRNGKey(0)
    k1, k2, k3 = jax.random.split(key, 3)

    def ref_norm(x):
        xf = x.reshape(x.shape[0], -1).astype(jnp.float32)
        nrm = jnp.maximum(
            jnp.sqrt(jnp.sum(xf * xf, axis=1, keepdims=True)), 1e-12
        )
        return (xf / nrm).reshape(x.shape).astype(x.dtype)

    # Case 1: the module's nominal small NCHW input (single-tile grid).
    x1 = jax.random.normal(k1, (2, 4, 16, 16), dtype=jnp.float32)
    o1 = jax.block_until_ready(pattern_norm(x1))
    assert o1.shape == x1.shape and o1.dtype == x1.dtype
    assert jnp.allclose(o1, ref_norm(x1), atol=1e-5, rtol=1e-5)

    # Case 2: larger batch, auto tile -> multi-step pipelined grid (tn=8,
    # 5 steps), plus a forced non-dividing row tile (trailing partial block).
    x2 = jax.random.normal(k2, (40, 8, 16, 16), dtype=jnp.float32)
    o2a = jax.block_until_ready(pattern_norm(x2))
    o2b = jax.block_until_ready(pattern_norm(x2, row_tile=16))
    r2 = ref_norm(x2)
    assert jnp.allclose(o2a, r2, atol=1e-5, rtol=1e-5)
    assert jnp.allclose(o2b, r2, atol=1e-5, rtol=1e-5)

    # Case 3: forced D-tiled two-pass path (non-dividing trailing D chunk
    # exercises the masked accumulate).
    x3 = jax.random.normal(k3, (16, 4, 16, 16), dtype=jnp.float32)
    o3 = jax.block_until_ready(pattern_norm(x3, row_tile=8, d_tile=384))
    assert jnp.allclose(o3, ref_norm(x3), atol=1e-5, rtol=1e-5)

    # Case 4: bf16 input -> kernel widens per element to f32.
    x4 = jax.random.normal(k2, (16, 4, 16, 16), dtype=jnp.bfloat16)
    o4 = jax.block_until_ready(pattern_norm(x4))
    assert o4.dtype == jnp.bfloat16
    assert jnp.allclose(
        o4.astype(jnp.float32), ref_norm(x4).astype(jnp.float32),
        atol=5e-3, rtol=5e-3)

    # <=2-dim input: identity passthrough, as in the reference module.
    x5 = jax.random.normal(k1, (8, 32), dtype=jnp.float32)
    assert pattern_norm(x5) is x5

    print("KERNEL_OK")
</pallas_src>

<mosaic_0001>
module attributes {stable_mosaic.version = 11 : i64} {
  func.func @_l2norm_kernel(%arg0: i32, %arg1: memref<2x1024xf32, #tpu.memory_space<vmem>>, %arg2: memref<2x1024xf32, #tpu.memory_space<vmem>>) attributes {dimension_semantics = [#tpu.dimension_semantics<parallel>], iteration_bounds = array<i64: 1>, scalar_prefetch = 0 : i64, scratch_operands = 0 : i64, tpu.core_type = #tpu.core_type<tc>, window_params = [{transform_indices = @transform_0, window_bounds = array<i64: 2, 1024>}, {transform_indices = @transform_1, window_bounds = array<i64: 2, 1024>}]} {
    %c0 = arith.constant 0 : index
    %c0_0 = arith.constant 0 : index
    %0 = vector.load %arg1[%c0, %c0_0] : memref<2x1024xf32, #tpu.memory_space<vmem>>, vector<2x1024xf32>
    %1 = arith.mulf %0, %0 : vector<2x1024xf32>
    %cst = arith.constant dense<0.000000e+00> : vector<2xf32>
    %2 = vector.multi_reduction <add>, %1, %cst [1] : vector<2x1024xf32> to vector<2xf32>
    %3 = vector.shape_cast %2 : vector<2xf32> to vector<2x1xf32>
    %cst_1 = arith.constant 1.000000e-24 : f32
    %4 = vector.broadcast %cst_1 : f32 to vector<2x1xf32>
    %5 = arith.maximumf %3, %4 : vector<2x1xf32>
    %6 = math.rsqrt %5 : vector<2x1xf32>
    %7 = vector.broadcast %6 : vector<2x1xf32> to vector<2x1024xf32>
    %8 = arith.mulf %0, %7 : vector<2x1024xf32>
    %c0_2 = arith.constant 0 : index
    %c0_3 = arith.constant 0 : index
    %9 = vector.load %arg2[%c0_2, %c0_3] : memref<2x1024xf32, #tpu.memory_space<vmem>>, vector<2x1024xf32>
    tpu.vector_store %arg2[%c0_2, %c0_3], %8 {strides = array<i32>} : memref<2x1024xf32, #tpu.memory_space<vmem>>, vector<2x1024xf32>,
    return
  }
  func.func @transform_0(%arg0: i32) -> (i32, i32) {
    %c0_i32 = arith.constant 0 : i32
    %c0_i32_0 = arith.constant 0 : i32
    return %arg0, %c0_i32 : i32, i32
  }
  func.func @transform_1(%arg0: i32) -> (i32, i32) {
    %c0_i32 = arith.constant 0 : i32
    %c0_i32_0 = arith.constant 0 : i32
    return %arg0, %c0_i32 : i32, i32
  }
}

</mosaic_0001>

<llo_original>
// kernel: tpu_custom_call.1
$region0: #{tpu_custom_call.1}
  #allocation0 [shape = 'u32[]', space=smem, size = 0x4, offset = 0x4, fixed_abs, tag = 'smem constant byte address 0x4 - core index']
  #allocation1 [shape = 'u32[144,128]{1,0:T(1,128)}', space=vmem, size = 0x12000, scoped, tag = 'internal scratch']
  %s0 = inlined_call_operand.hbm [shape: f32[2,1024], index: 0, kind: input, shape index: {}]
  %s1 = inlined_call_operand.hbm [shape: f32[2,1024], index: 1, kind: output, shape index: {}]
  %s2 = sld [smem:[#allocation0]]
  $region18: #{tpu_custom_call.1} parent=0
    _
  %s4 = ssub.s32 1, %s2
  %s5 = scalar_select 0, %s4, %s2
  $region1: #{tpu_custom_call.1} parent=0
    #allocation2 [shape = 'u8[8192]{0}', space=vmem, size = 0x2000, scoped, tag = 'input window, operand 0, single buffered']
    #allocation3 [shape = 's32[1]{0}', space=sflag, size = 0x4, scoped, tag = 'scoped memory for tpu_custom_call.1']
    #allocation4 [shape = 's32[1]{0}', space=sflag, size = 0x4, scoped, tag = 'scoped memory for tpu_custom_call.1']
    #allocation5 [shape = 'u8[8192]{0}', space=vmem, size = 0x2000, scoped, tag = 'output window, operand 0, single buffered']
    %6 = vsyncpa [#allocation3], 0
    %7 = vsyncpa [#allocation4], 0
    // Predicated region
    $region2: #{tpu_custom_call.1} parent=1 // pred_check
      _
    $region3: #{tpu_custom_call.1} parent=1 // pred_check_branch
      %9 = sbr.rel (0) target = $region5
    $region4: #{tpu_custom_call.1} parent=1 // pred_region
      %s11 = ssub.s32 256, 256
      %12 = vsyncadd [#allocation3], %s11
      %s14 = sshll.u32 [#allocation2], 4
      %s15 = int_to_ptr.vmem [resolvable:$true] %s14
      %17 = dma.hbm_to_vmem [thread:$0]  %s0, 256, %s15, [#allocation3]
    $region5: #{tpu_custom_call.1} parent=1 // pred_fallthru
      _
    // Predicated region
    $region6: #{tpu_custom_call.1} parent=1 // pred_check
      _
    $region7: #{tpu_custom_call.1} parent=1 // pred_check_branch
      %19 = sbr.rel (0) target = $region9
    $region8: #{tpu_custom_call.1} parent=1 // pred_region
      %20 = dma.done [#allocation3], 256
    $region9: #{tpu_custom_call.1} parent=1 // pred_fallthru
      _
    %v21 = vld [vmem:[#allocation2] sm:$0xff]
    %v22 = vld [vmem:[#allocation2 + $0x8] sm:$0xff]
    %v23 = vmul.f32 %v21, %v21
    %v24 = vmul.f32 %v22, %v22
    %v27 = vcombine.high %v23, %v23
    %v29 = vunpack.c.l.s4 1983009808
    %v30 = vunpack.c.0.s8 %v29
    %v31 = vlaneseq
    %v32 = vshrl.u32 %v31, 7
    %v33 = vsub.s32 %v30, %v32
    %v34 = vrot.slane %v23, %v33
    %v36 = vunpack.c.l.s4 1983009808
    %v37 = vunpack.c.0.s8 %v36
    %v38 = vlaneseq
    %v39 = vshrl.u32 %v38, 7
    %v40 = vsub.s32 %v37, %v39
    %v41 = vrot.slane %v27, %v40
    %v42 = vcombine.high %v34, %v34
    %v43 = vcombine.high %v41, %v41
    %v44 = vcombine.high %v24, %v24
    %v46 = vunpack.c.l.s4 1983009808
    %v47 = vunpack.c.0.s8 %v46
    %v48 = vlaneseq
    %v49 = vshrl.u32 %v48, 7
    %v50 = vsub.s32 %v47, %v49
    %v51 = vrot.slane %v24, %v50
    %v53 = vunpack.c.l.s4 1983009808
    %v54 = vunpack.c.0.s8 %v53
    %v55 = vlaneseq
    %v56 = vshrl.u32 %v55, 7
    %v57 = vsub.s32 %v54, %v56
    %v58 = vrot.slane %v44, %v57
    %v59 = vcombine.high %v51, %v51
    %v60 = vcombine.high %v58, %v58
    %vm69 = vcmask 1041408
    %v70 = vsel %vm69, %v34, 0.0
    %v71 = vsel %vm69, %v42, 0.0
    %v72 = vadd.f32 %v70, %v71
    %v73 = vsel %vm69, %v41, 0.0
    %v74 = vadd.f32 %v72, %v73
    %v75 = vsel %vm69, %v43, 0.0
    %v76 = vadd.f32 %v74, %v75
    %v77 = vsel %vm69, %v51, 0.0
    %v78 = vadd.f32 %v76, %v77
    %v79 = vsel %vm69, %v59, 0.0
    %v80 = vadd.f32 %v78, %v79
    %v81 = vsel %vm69, %v58, 0.0
    %v82 = vadd.f32 %v80, %v81
    %v83 = vsel %vm69, %v60, 0.0
    %v84 = vadd.f32 %v82, %v83
    %85 = vadd.xlane.f32.xlu0 %v84
    %v86 = vpop.xlane.xlu0 %85
    %v87 = vmax.f32 %v86, 1e-24
    %v88 = vrsqrt.pop %v87
    %v91 = vunpack.c.l.s4 269488144
    %v92 = vunpack.c.0.s8 %v91
    %v93 = vlaneseq
    %v94 = vshrl.u32 %v93, 7
    %v95 = vsub.s32 %v92, %v94
    %v96 = vrot.slane %v88, %v95
    %v98 = vmul.f32 %v21, %v96
    %v99 = vmul.f32 %v22, %v96
    %100 = vst [vmem:[#allocation5] sm:$0xff] %v98
    %101 = vst [vmem:[#allocation5 + $0x8] sm:$0xff] %v99
    // Predicated region
    $region10: #{tpu_custom_call.1} parent=1 // pred_check
      _
    $region11: #{tpu_custom_call.1} parent=1 // pred_check_branch
      %103 = sbr.rel (0) target = $region13
    $region12: #{tpu_custom_call.1} parent=1 // pred_region
      %s105 = ssub.s32 256, 256
      %106 = vsyncadd [#allocation4], %s105
      %s108 = sshll.u32 [#allocation5], 4
      %s109 = int_to_ptr.vmem [resolvable:$true] %s108
      %111 = dma.vmem_to_hbm [thread:$0]  %s109, 256, %s1, [#allocation4]
    $region13: #{tpu_custom_call.1} parent=1 // pred_fallthru
      _
    // Predicated region
    $region14: #{tpu_custom_call.1} parent=1 // pred_check
      _
    $region15: #{tpu_custom_call.1} parent=1 // pred_check_branch
      %113 = sbr.rel (0) target = $region17
    $region16: #{tpu_custom_call.1} parent=1 // pred_region
      %114 = dma.done [#allocation4], 256
    $region17: #{tpu_custom_call.1} parent=1 // pred_fallthru
      _
    %115 = vsyncpa [#allocation3], 1
    %116 = vsyncpa [#allocation4], 1

</llo_original>
